<compile_context>
chip_gen: v7x
topology: tpu7x:2x2x1
jax: 0.10.0
libtpu: 0.0.40
codegen_flags: <defaults>
</compile_context>

<pallas_src>
import functools
import math

import jax
import jax.numpy as jnp
import numpy as np
from jax.experimental import pallas as pl
from jax.experimental.pallas import tpu as pltpu

OUT_W = 8  # real output width of the final Linear (4 mean + 4 log-var)


def actor_mlp_kernel(x_ref, w1_ref, b1_ref, w2_ref, b2_ref, w3_ref, b3_ref,
                     out_ref):
    # Input tile arrives as f32; cast to bf16 on the VPU for the MXU.
    x = x_ref[...].astype(jnp.bfloat16)
    # Layer 1: (TB, inp) @ (inp, 64) + (1, 64), ReLU   (bf16 in, f32 acc)
    h1 = jnp.dot(x, w1_ref[...],
                 preferred_element_type=jnp.float32) + b1_ref[...]
    h1 = jnp.maximum(h1, 0.0).astype(jnp.bfloat16)
    # Layer 2: (TB, 64) @ (64, 128) + (1, 128), ReLU
    h2 = jnp.dot(h1, w2_ref[...],
                 preferred_element_type=jnp.float32) + b2_ref[...]
    h2 = jnp.maximum(h2, 0.0).astype(jnp.bfloat16)
    # Layer 3: (TB, 128) @ (128, 8) + (1, 8)
    h3 = jnp.dot(h2, w3_ref[...],
                 preferred_element_type=jnp.float32) + b3_ref[...]
    # Fused head: columns >= 4 are log-variance -> exp (EUP slot).  exp is
    # evaluated on the mean columns too and discarded by the select; harmless
    # (select, not arithmetic) even if those lanes overflow to inf.
    col = jax.lax.broadcasted_iota(jnp.int32, h3.shape, 1)
    out_ref[...] = jnp.where(col >= 4, jnp.exp(h3), h3)


def _round_up(x, m):
    return (x + m - 1) // m * m


def _choose_tile(batch, block_b):
    """Pick a sublane-aligned batch tile and the padded batch size."""
    block_b = _round_up(max(block_b, 8), 8)          # guard misaligned callers
    b8 = _round_up(batch, 8)
    tb = min(block_b, b8)
    # v7x has 2 TensorCores: keep >= 2 "parallel" grid steps when B allows it.
    if b8 // tb < 2 and b8 >= 16:
        tb = _round_up(-(-b8 // 2), 8)
    bp = _round_up(batch, tb)
    return tb, bp


@functools.partial(jax.jit, static_argnames=("block_b",))
def actor_mlp_batched(xb, params, block_b=1024):
    """Fused MLP over a batch of states.

    xb: (B, inp_size) f32.  Returns (mean (B,4), var (B,4)) where var is
    already exp(log_var) (the diagonal of the MVN covariance).
    """
    w1, b1, w2, b2, w3, b3 = params
    B, inp = xb.shape
    tb, Bp = _choose_tile(B, block_b)

    xb = xb.astype(jnp.float32)
    if Bp != B:
        # Only pad when B is not tile-aligned; common aligned case is free.
        xp = jnp.zeros((Bp, inp), jnp.float32).at[:B].set(xb)
    else:
        xp = xb

    flops = 2 * Bp * (inp * 64 + 64 * 128 + 128 * OUT_W)
    bytes_accessed = (Bp * inp * 4                                   # input f32
                      + (inp * 64 + 64 * 128 + 128 * OUT_W) * 2      # bf16 W
                      + (64 + 128 + OUT_W) * 4                       # f32 b
                      + Bp * OUT_W * 4)                              # output
    cost = pl.CostEstimate(flops=flops, transcendentals=4 * Bp,
                           bytes_accessed=bytes_accessed)

    out = pl.pallas_call(
        actor_mlp_kernel,
        out_shape=jax.ShapeDtypeStruct((Bp, OUT_W), jnp.float32),
        grid=(Bp // tb,),
        in_specs=[
            pl.BlockSpec((tb, inp), lambda i: (i, 0)),       # x tile (f32)
            pl.BlockSpec(w1.shape, lambda i: (0, 0)),        # weights: fully
            pl.BlockSpec(b1.shape, lambda i: (0, 0)),        # resident, const
            pl.BlockSpec(w2.shape, lambda i: (0, 0)),        # block index so
            pl.BlockSpec(b2.shape, lambda i: (0, 0)),        # the pipeliner
            pl.BlockSpec(w3.shape, lambda i: (0, 0)),        # dedupes the DMA
            pl.BlockSpec(b3.shape, lambda i: (0, 0)),
        ],
        out_specs=pl.BlockSpec((tb, OUT_W), lambda i: (i, 0)),
        compiler_params=pltpu.CompilerParams(
            dimension_semantics=("parallel",)),
        cost_estimate=cost,
    )(xp, w1, b1, w2, b2, w3, b3)

    if Bp != B:
        out = out[:B]
    mean = out[:, :4]
    var = out[:, 4:OUT_W]      # exp already applied inside the kernel
    return mean, var


def actor_forward(x, params):
    """Single-state forward matching torch Actor.forward semantics.

    Returns (mean, cov, transform_scale, transform_loc); torch would wrap
    these as TransformedDistribution(MVN(mean, cov),
                                     [Sigmoid, Affine(scale=2, loc=-1)]).
    """
    inp_size = x.shape[0]
    mean, var = actor_mlp_batched(x.reshape(1, inp_size), params)
    mean = mean[0]                    # (4,)
    cov = jnp.diag(var[0])            # (4, 4) == diag(exp(op[4:])), as in torch
    # TODO(synk): MultivariateNormal / TransformedDistribution (sampling,
    # log_prob through Sigmoid + Affine(scale=2, loc=-1)) has no tensor-level
    # Pallas equivalent; we return the distribution parameters instead.
    transform_scale = jnp.float32(2.0)
    transform_loc = jnp.float32(-1.0)
    return mean, cov, transform_scale, transform_loc


def init_actor_params_f32(key, inp_size):
    """Xavier-uniform weights + zero biases in f32, matching torch __init__.

    Weights are stored (in_features, out_features), i.e. transposed relative
    to torch.nn.Linear, so y = x @ W + b matches torch exactly.
    """
    def xavier(key, fan_in, fan_out):
        bound = math.sqrt(6.0 / (fan_in + fan_out))
        return jax.random.uniform(key, (fan_in, fan_out), jnp.float32,
                                  minval=-bound, maxval=bound)

    k1, k2, k3 = jax.random.split(key, 3)
    w1 = xavier(k1, inp_size, 64)
    b1 = jnp.zeros((1, 64), jnp.float32)
    w2 = xavier(k2, 64, 128)
    b2 = jnp.zeros((1, 128), jnp.float32)
    w3 = xavier(k3, 128, OUT_W)
    b3 = jnp.zeros((1, OUT_W), jnp.float32)
    return (w1, b1, w2, b2, w3, b3)


def prepare_kernel_params(params_f32):
    """One-time conversion to kernel layout: bf16 weights, f32 biases.

    Do this once and keep the result device-resident (no per-call astype).
    """
    w1, b1, w2, b2, w3, b3 = params_f32
    return (w1.astype(jnp.bfloat16), b1.astype(jnp.float32),
            w2.astype(jnp.bfloat16), b2.astype(jnp.float32),
            w3.astype(jnp.bfloat16), b3.astype(jnp.float32))


def actor_reference(xb, params_f32):
    """Pure-JAX f32 reference of the torch MLP + exp head (for validation)."""
    w1, b1, w2, b2, w3, b3 = params_f32
    h1 = jnp.maximum(xb @ w1 + b1, 0.0)
    h2 = jnp.maximum(h1 @ w2 + b2, 0.0)
    op = h2 @ w3 + b3
    return op[:, :4], jnp.exp(op[:, 4:])


if __name__ == "__main__":
    inp_size = 16
    batch = 64

    key = jax.random.PRNGKey(0)
    key_params, key_x, key_xb = jax.random.split(key, 3)

    params_f32 = init_actor_params_f32(key_params, inp_size)
    params = prepare_kernel_params(params_f32)

    # --- single-state forward (matches torch Actor.forward semantics) ---
    x = jax.random.normal(key_x, (inp_size,), jnp.float32)
    mean, cov, t_scale, t_loc = actor_forward(x, params)
    jax.block_until_ready((mean, cov, t_scale, t_loc))
    assert mean.shape == (4,)
    assert cov.shape == (4, 4)

    # --- batched forward (amortizes launch + weight DMA across states) ---
    xb = jax.random.normal(key_xb, (batch, inp_size), jnp.float32)
    mean_b, var_b = actor_mlp_batched(xb, params)
    jax.block_until_ready((mean_b, var_b))
    assert mean_b.shape == (batch, 4)
    assert var_b.shape == (batch, 4)

    # Validate against the f32 pure-JAX reference (bf16 MXU tolerance).
    ref_mean, ref_var = actor_reference(xb, params_f32)
    np.testing.assert_allclose(np.asarray(mean_b), np.asarray(ref_mean),
                               rtol=5e-2, atol=5e-2)
    np.testing.assert_allclose(np.asarray(var_b), np.asarray(ref_var),
                               rtol=5e-2, atol=5e-2)
    ref_mean1, ref_var1 = actor_reference(x.reshape(1, -1), params_f32)
    np.testing.assert_allclose(np.asarray(mean), np.asarray(ref_mean1[0]),
                               rtol=5e-2, atol=5e-2)
    np.testing.assert_allclose(np.asarray(jnp.diag(cov)),
                               np.asarray(ref_var1[0]),
                               rtol=5e-2, atol=5e-2)

    print("KERNEL_OK")
</pallas_src>

<mosaic_0001>
module attributes {stable_mosaic.version = 11 : i64} {
  func.func @actor_mlp_kernel(%arg0: i32, %arg1: memref<8x16xf32, #tpu.memory_space<vmem>>, %arg2: memref<16x64xbf16, #tpu.memory_space<vmem>>, %arg3: memref<1x64xf32, #tpu.memory_space<vmem>>, %arg4: memref<64x128xbf16, #tpu.memory_space<vmem>>, %arg5: memref<1x128xf32, #tpu.memory_space<vmem>>, %arg6: memref<128x8xbf16, #tpu.memory_space<vmem>>, %arg7: memref<1x8xf32, #tpu.memory_space<vmem>>, %arg8: memref<8x8xf32, #tpu.memory_space<vmem>>) attributes {dimension_semantics = [#tpu.dimension_semantics<parallel>], iteration_bounds = array<i64: 1>, scalar_prefetch = 0 : i64, scratch_operands = 0 : i64, tpu.core_type = #tpu.core_type<tc>, window_params = [{transform_indices = @transform_0, window_bounds = array<i64: 8, 16>}, {pipeline_mode = #tpu.pipeline_mode<synchronous>, transform_indices = @transform_1, window_bounds = array<i64: 16, 64>}, {pipeline_mode = #tpu.pipeline_mode<synchronous>, transform_indices = @transform_2, window_bounds = array<i64: 1, 64>}, {pipeline_mode = #tpu.pipeline_mode<synchronous>, transform_indices = @transform_3, window_bounds = array<i64: 64, 128>}, {pipeline_mode = #tpu.pipeline_mode<synchronous>, transform_indices = @transform_4, window_bounds = array<i64: 1, 128>}, {pipeline_mode = #tpu.pipeline_mode<synchronous>, transform_indices = @transform_5, window_bounds = array<i64: 128, 8>}, {pipeline_mode = #tpu.pipeline_mode<synchronous>, transform_indices = @transform_6, window_bounds = array<i64: 1, 8>}, {transform_indices = @transform_7, window_bounds = array<i64: 8, 8>}]} {
    %c0 = arith.constant 0 : index
    %c0_0 = arith.constant 0 : index
    %0 = vector.load %arg1[%c0, %c0_0] : memref<8x16xf32, #tpu.memory_space<vmem>>, vector<8x16xf32>
    %1 = arith.truncf %0 : vector<8x16xf32> to vector<8x16xbf16>
    %c0_1 = arith.constant 0 : index
    %c0_2 = arith.constant 0 : index
    %2 = vector.load %arg2[%c0_1, %c0_2] : memref<16x64xbf16, #tpu.memory_space<vmem>>, vector<16x64xbf16>
    %cst = arith.constant dense<0.000000e+00> : vector<8x64xf32>
    %3 = tpu.matmul %1, %2, %cst {dimension_numbers = #tpu.dot_dimension_numbers<[1], [0], [0], [1], [0, 0, 1, 1], [], []>} : vector<8x16xbf16>, vector<16x64xbf16>, vector<8x64xf32> -> vector<8x64xf32>
    %c0_3 = arith.constant 0 : index
    %c0_4 = arith.constant 0 : index
    %4 = vector.load %arg3[%c0_3, %c0_4] : memref<1x64xf32, #tpu.memory_space<vmem>>, vector<1x64xf32>
    %5 = vector.broadcast %4 : vector<1x64xf32> to vector<8x64xf32>
    %6 = arith.addf %3, %5 : vector<8x64xf32>
    %cst_5 = arith.constant 0.000000e+00 : f32
    %7 = vector.broadcast %cst_5 : f32 to vector<8x64xf32>
    %8 = arith.maximumf %6, %7 : vector<8x64xf32>
    %9 = arith.truncf %8 : vector<8x64xf32> to vector<8x64xbf16>
    %c0_6 = arith.constant 0 : index
    %c0_7 = arith.constant 0 : index
    %10 = vector.load %arg4[%c0_6, %c0_7] : memref<64x128xbf16, #tpu.memory_space<vmem>>, vector<64x128xbf16>
    %cst_8 = arith.constant dense<0.000000e+00> : vector<8x128xf32>
    %11 = tpu.matmul %9, %10, %cst_8 {dimension_numbers = #tpu.dot_dimension_numbers<[1], [0], [0], [1], [0, 0, 1, 1], [], []>} : vector<8x64xbf16>, vector<64x128xbf16>, vector<8x128xf32> -> vector<8x128xf32>
    %c0_9 = arith.constant 0 : index
    %c0_10 = arith.constant 0 : index
    %12 = vector.load %arg5[%c0_9, %c0_10] : memref<1x128xf32, #tpu.memory_space<vmem>>, vector<1x128xf32>
    %13 = vector.broadcast %12 : vector<1x128xf32> to vector<8x128xf32>
    %14 = arith.addf %11, %13 : vector<8x128xf32>
    %cst_11 = arith.constant 0.000000e+00 : f32
    %15 = vector.broadcast %cst_11 : f32 to vector<8x128xf32>
    %16 = arith.maximumf %14, %15 : vector<8x128xf32>
    %17 = arith.truncf %16 : vector<8x128xf32> to vector<8x128xbf16>
    %c0_12 = arith.constant 0 : index
    %c0_13 = arith.constant 0 : index
    %18 = vector.load %arg6[%c0_12, %c0_13] : memref<128x8xbf16, #tpu.memory_space<vmem>>, vector<128x8xbf16>
    %cst_14 = arith.constant dense<0.000000e+00> : vector<8x8xf32>
    %19 = tpu.matmul %17, %18, %cst_14 {dimension_numbers = #tpu.dot_dimension_numbers<[1], [0], [0], [1], [0, 0, 1, 1], [], []>} : vector<8x128xbf16>, vector<128x8xbf16>, vector<8x8xf32> -> vector<8x8xf32>
    %c0_15 = arith.constant 0 : index
    %c0_16 = arith.constant 0 : index
    %20 = vector.load %arg7[%c0_15, %c0_16] : memref<1x8xf32, #tpu.memory_space<vmem>>, vector<1x8xf32>
    %21 = vector.broadcast %20 : vector<1x8xf32> to vector<8x8xf32>
    %22 = arith.addf %19, %21 : vector<8x8xf32>
    %23 = tpu.iota {dimensions = array<i32: 1>} : vector<8x8xi32>
    %c4_i32 = arith.constant 4 : i32
    %24 = vector.broadcast %c4_i32 : i32 to vector<8x8xi32>
    %25 = arith.cmpi sge, %23, %24 : vector<8x8xi32>
    %26 = math.exp %22 : vector<8x8xf32>
    %27 = arith.select %25, %26, %22 : vector<8x8xi1>, vector<8x8xf32>
    %c0_17 = arith.constant 0 : index
    %c0_18 = arith.constant 0 : index
    %28 = vector.load %arg8[%c0_17, %c0_18] : memref<8x8xf32, #tpu.memory_space<vmem>>, vector<8x8xf32>
    tpu.vector_store %arg8[%c0_17, %c0_18], %27 {strides = array<i32>} : memref<8x8xf32, #tpu.memory_space<vmem>>, vector<8x8xf32>,
    return
  }
  func.func @transform_0(%arg0: i32) -> (i32, i32) {
    %c0_i32 = arith.constant 0 : i32
    %c0_i32_0 = arith.constant 0 : i32
    return %arg0, %c0_i32 : i32, i32
  }
  func.func @transform_1(%arg0: i32) -> (i32, i32) {
    %c0_i32 = arith.constant 0 : i32
    %c0_i32_0 = arith.constant 0 : i32
    %c0_i32_1 = arith.constant 0 : i32
    return %c0_i32, %c0_i32_0 : i32, i32
  }
  func.func @transform_2(%arg0: i32) -> (i32, i32) {
    %c0_i32 = arith.constant 0 : i32
    %c0_i32_0 = arith.constant 0 : i32
    %c0_i32_1 = arith.constant 0 : i32
    return %c0_i32, %c0_i32_0 : i32, i32
  }
  func.func @transform_3(%arg0: i32) -> (i32, i32) {
    %c0_i32 = arith.constant 0 : i32
    %c0_i32_0 = arith.constant 0 : i32
    %c0_i32_1 = arith.constant 0 : i32
    return %c0_i32, %c0_i32_0 : i32, i32
  }
  func.func @transform_4(%arg0: i32) -> (i32, i32) {
    %c0_i32 = arith.constant 0 : i32
    %c0_i32_0 = arith.constant 0 : i32
    %c0_i32_1 = arith.constant 0 : i32
    return %c0_i32, %c0_i32_0 : i32, i32
  }
  func.func @transform_5(%arg0: i32) -> (i32, i32) {
    %c0_i32 = arith.constant 0 : i32
    %c0_i32_0 = arith.constant 0 : i32
    %c0_i32_1 = arith.constant 0 : i32
    return %c0_i32, %c0_i32_0 : i32, i32
  }
  func.func @transform_6(%arg0: i32) -> (i32, i32) {
    %c0_i32 = arith.constant 0 : i32
    %c0_i32_0 = arith.constant 0 : i32
    %c0_i32_1 = arith.constant 0 : i32
    return %c0_i32, %c0_i32_0 : i32, i32
  }
  func.func @transform_7(%arg0: i32) -> (i32, i32) {
    %c0_i32 = arith.constant 0 : i32
    %c0_i32_0 = arith.constant 0 : i32
    return %arg0, %c0_i32 : i32, i32
  }
}

</mosaic_0001>

<llo_original>
// kernel: actor_mlp_batched.1
$region0: #{actor_mlp_batched.1}
  #allocation0 [shape = 'u32[]', space=smem, size = 0x4, offset = 0x4, fixed_abs, tag = 'smem constant byte address 0x4 - core index']
  #allocation1 [shape = 'u32[144,128]{1,0:T(1,128)}', space=vmem, size = 0x12000, scoped, tag = 'internal scratch']
  %s0 = inlined_call_operand.vmem [shape: f32[8,16], index: 0, kind: input, shape index: {}]
  %s1 = inlined_call_operand.vmem [shape: bf16[16,64], index: 1, kind: input, shape index: {}]
  %s2 = inlined_call_operand.vmem [shape: f32[1,64], index: 2, kind: input, shape index: {}]
  %s3 = inlined_call_operand.vmem [shape: bf16[64,128], index: 3, kind: input, shape index: {}]
  %s4 = inlined_call_operand.vmem [shape: f32[1,128], index: 4, kind: input, shape index: {}]
  %s5 = inlined_call_operand.vmem [shape: bf16[128,8], index: 5, kind: input, shape index: {}]
  %s6 = inlined_call_operand.vmem [shape: f32[1,8], index: 6, kind: input, shape index: {}]
  %s7 = inlined_call_operand.vmem [shape: f32[8,8], index: 7, kind: output, shape index: {}]
  %s8 = sld [smem:[#allocation0]]
  $region38: #{actor_mlp_batched.1} parent=0
    _
  %s10 = ssub.s32 1, %s8
  %s11 = scalar_select 0, %s10, %s8
  // Predicated region
  $region2: #{actor_mlp_batched.1} parent=0 // pred_check
    _
  $region3: #{actor_mlp_batched.1} parent=0 // pred_check_branch
    %13 = sbr.rel (0) target = $region5
  $region4: #{actor_mlp_batched.1} parent=0 // pred_region
    _
  $region5: #{actor_mlp_batched.1} parent=0 // pred_fallthru
    _
  // Predicated region
  $region6: #{actor_mlp_batched.1} parent=0 // pred_check
    _
  $region7: #{actor_mlp_batched.1} parent=0 // pred_check_branch
    %15 = sbr.rel (0) target = $region9
  $region8: #{actor_mlp_batched.1} parent=0 // pred_region
    _
  $region9: #{actor_mlp_batched.1} parent=0 // pred_fallthru
    _
  // Predicated region
  $region10: #{actor_mlp_batched.1} parent=0 // pred_check
    _
  $region11: #{actor_mlp_batched.1} parent=0 // pred_check_branch
    %17 = sbr.rel (0) target = $region13
  $region12: #{actor_mlp_batched.1} parent=0 // pred_region
    _
  $region13: #{actor_mlp_batched.1} parent=0 // pred_fallthru
    _
  // Predicated region
  $region14: #{actor_mlp_batched.1} parent=0 // pred_check
    _
  $region15: #{actor_mlp_batched.1} parent=0 // pred_check_branch
    %19 = sbr.rel (0) target = $region17
  $region16: #{actor_mlp_batched.1} parent=0 // pred_region
    _
  $region17: #{actor_mlp_batched.1} parent=0 // pred_fallthru
    _
  // Predicated region
  $region18: #{actor_mlp_batched.1} parent=0 // pred_check
    _
  $region19: #{actor_mlp_batched.1} parent=0 // pred_check_branch
    %21 = sbr.rel (0) target = $region21
  $region20: #{actor_mlp_batched.1} parent=0 // pred_region
    _
  $region21: #{actor_mlp_batched.1} parent=0 // pred_fallthru
    _
  // Predicated region
  $region22: #{actor_mlp_batched.1} parent=0 // pred_check
    _
  $region23: #{actor_mlp_batched.1} parent=0 // pred_check_branch
    %23 = sbr.rel (0) target = $region25
  $region24: #{actor_mlp_batched.1} parent=0 // pred_region
    _
  $region25: #{actor_mlp_batched.1} parent=0 // pred_fallthru
    _
  // Predicated region
  $region26: #{actor_mlp_batched.1} parent=0 // pred_check
    _
  $region27: #{actor_mlp_batched.1} parent=0 // pred_check_branch
    %25 = sbr.rel (0) target = $region29
  $region28: #{actor_mlp_batched.1} parent=0 // pred_region
    _
  $region29: #{actor_mlp_batched.1} parent=0 // pred_fallthru
    _
  %v27 = vld [vmem:[%s0] sm:$0xff]
  %v28 = vpack.c.bf16 %v27, %v27
  %v29 = vld [vmem:[%s1] sm:$0xf]
  %v30 = vld [vmem:[%s1 + $0x4] sm:$0xf]
  %v31 = vld [vmem:[%s2] sm:$0x1]
  %v33 = vlaneseq
  %v34 = vshrl.u32 %v33, 7
  %v35 = vsub.s32 0, %v34
  %v36 = vrot.slane %v31, %v35
  %v40 = vunpack.c.l.b16 %v29
  %v41 = vunpack.c.l.b16 %v30
  %v42 = vpack.c.b16 %v41, %v40
  %vm44 = vcmask 130048
  %v46 = vsel %vm44, %v28, 0
  %48 = vmatprep.subr.bf16.mxu0 0
  %49 = vmatpush1.bf16.msra.mxu0 %v42
  %50 = vmatprep.subr.bf16.mxu0 0
  %51 = vmatpush1.bf16.msra.mxu0 0
  %52 = vmatprep.subr.bf16.mxu0 0
  %53 = vmatpush1.bf16.msra.mxu0 0
  %54 = vmatprep.subr.bf16.mxu0 0
  %55 = vmatpush1.bf16.msra.mxu0 0
  %56 = vmatprep.subr.bf16.mxu0 0
  %57 = vmatpush1.bf16.msra.mxu0 0
  %58 = vmatprep.subr.bf16.mxu0 0
  %59 = vmatpush1.bf16.msra.mxu0 0
  %60 = vmatprep.subr.bf16.mxu0 0
  %61 = vmatpush1.bf16.msra.mxu0 0
  %62 = vmatprep.subr.bf16.mxu0 0
  %63 = vmatpush1.bf16.msra.mxu0 0
  %64 = vmatprep.subr.bf16.mxu0 0
  %65 = vmatpush1.bf16.msra.mxu0 0
  %66 = vmatprep.subr.bf16.mxu0 0
  %67 = vmatpush1.bf16.msra.mxu0 0
  %68 = vmatprep.subr.bf16.mxu0 0
  %69 = vmatpush1.bf16.msra.mxu0 0
  %70 = vmatprep.subr.bf16.mxu0 0
  %71 = vmatpush1.bf16.msra.mxu0 0
  %72 = vmatprep.subr.bf16.mxu0 0
  %73 = vmatpush1.bf16.msra.mxu0 0
  %74 = vmatprep.subr.bf16.mxu0 0
  %75 = vmatpush1.bf16.msra.mxu0 0
  %76 = vmatprep.subr.bf16.mxu0 0
  %77 = vmatpush1.bf16.msra.mxu0 0
  %78 = vmatprep.subr.bf16.mxu0 0
  %79 = vmatpush1.bf16.msra.mxu0 0
  %80 = vmatprep.mubr.bf16.mxu0 0
  %81 = vmatmul.mubr.bf16.gmra.mrb[0].mxu0 %v46
  %v82 = vpop.f32.mrb[0].mxu0
  %v83 = vadd.f32 %v36, %v82
  %v84 = vpop.f32.mrb[0].mxu0
  %v85 = vpop.f32.mrb[0].mxu0
  %v86 = vpop.f32.mrb[0].mxu0
  %87 = vdwg.mxu0
  %v88 = vmax.f32 %v83, 0.0
  %v89 = vpack.c.bf16 %v88, %v88
  %v90 = vld [vmem:[%s3] sm:$0xf]
  %v91 = vld [vmem:[%s3 + $0x4] sm:$0xf]
  %v92 = vld [vmem:[%s3 + $0x8] sm:$0xf]
  %v93 = vld [vmem:[%s3 + $0xc] sm:$0xf]
  %v94 = vld [vmem:[%s3 + $0x10] sm:$0xf]
  %v95 = vld [vmem:[%s3 + $0x14] sm:$0xf]
  %v96 = vld [vmem:[%s3 + $0x18] sm:$0xf]
  %v97 = vld [vmem:[%s3 + $0x1c] sm:$0xf]
  %v98 = vld [vmem:[%s4] sm:$0x1]
  %v100 = vlaneseq
  %v101 = vshrl.u32 %v100, 7
  %v102 = vsub.s32 0, %v101
  %v103 = vrot.slane %v98, %v102
  %v113 = vunpack.c.l.b16 %v90
  %v114 = vunpack.c.l.b16 %v91
  %v115 = vunpack.c.l.b16 %v92
  %v116 = vunpack.c.l.b16 %v93
  %v117 = vunpack.c.l.b16 %v94
  %v118 = vunpack.c.l.b16 %v95
  %v119 = vunpack.c.l.b16 %v96
  %v120 = vunpack.c.l.b16 %v97
  %v121 = vpack.c.b16 %v114, %v113
  %v122 = vpack.c.b16 %v116, %v115
  %v123 = vpack.c.b16 %v118, %v117
  %v124 = vpack.c.b16 %v120, %v119
  %vm129 = vcmask 523264
  %v131 = vsel %vm129, %v89, 0
  %133 = vmatprep.subr.bf16.mxu0 0
  %134 = vmatpush1.bf16.msra.mxu0 %v121
  %135 = vmatprep.subr.bf16.mxu0 0
  %136 = vmatpush1.bf16.msra.mxu0 %v122
  %137 = vmatprep.subr.bf16.mxu0 0
  %138 = vmatpush1.bf16.msra.mxu0 %v123
  %139 = vmatprep.subr.bf16.mxu0 0
  %140 = vmatpush1.bf16.msra.mxu0 %v124
  %141 = vmatprep.subr.bf16.mxu0 0
  %142 = vmatpush1.bf16.msra.mxu0 0
  %143 = vmatprep.subr.bf16.mxu0 0
  %144 = vmatpush1.bf16.msra.mxu0 0
  %145 = vmatprep.subr.bf16.mxu0 0
  %146 = vmatpush1.bf16.msra.mxu0 0
  %147 = vmatprep.subr.bf16.mxu0 0
  %148 = vmatpush1.bf16.msra.mxu0 0
  %149 = vmatprep.subr.bf16.mxu0 0
  %150 = vmatpush1.bf16.msra.mxu0 0
  %151 = vmatprep.subr.bf16.mxu0 0
  %152 = vmatpush1.bf16.msra.mxu0 0
  %153 = vmatprep.subr.bf16.mxu0 0
  %154 = vmatpush1.bf16.msra.mxu0 0
  %155 = vmatprep.subr.bf16.mxu0 0
  %156 = vmatpush1.bf16.msra.mxu0 0
  %157 = vmatprep.subr.bf16.mxu0 0
  %158 = vmatpush1.bf16.msra.mxu0 0
  %159 = vmatprep.subr.bf16.mxu0 0
  %160 = vmatpush1.bf16.msra.mxu0 0
  %161 = vmatprep.subr.bf16.mxu0 0
  %162 = vmatpush1.bf16.msra.mxu0 0
  %163 = vmatprep.subr.bf16.mxu0 0
  %164 = vmatpush1.bf16.msra.mxu0 0
  %165 = vmatprep.mubr.bf16.mxu0 0
  %166 = vmatmul.mubr.bf16.gmra.mrb[0].mxu0 %v131
  %v167 = vpop.f32.mrb[0].mxu0
  %v168 = vadd.f32 %v103, %v167
  %v169 = vpop.f32.mrb[0].mxu0
  %v170 = vpop.f32.mrb[0].mxu0
  %v171 = vpop.f32.mrb[0].mxu0
  %172 = vdwg.mxu0
  %v173 = vmax.f32 %v168, 0.0
  %v174 = vpack.c.bf16 %v173, %v173
  %v175 = vld [vmem:[%s5] sm:$0xf]
  %v176 = vld [vmem:[%s5 + $0x4] sm:$0xf]
  %v177 = vld [vmem:[%s5 + $0x8] sm:$0xf]
  %v178 = vld [vmem:[%s5 + $0xc] sm:$0xf]
  %v179 = vld [vmem:[%s5 + $0x10] sm:$0xf]
  %v180 = vld [vmem:[%s5 + $0x14] sm:$0xf]
  %v181 = vld [vmem:[%s5 + $0x18] sm:$0xf]
  %v182 = vld [vmem:[%s5 + $0x1c] sm:$0xf]
  %v183 = vld [vmem:[%s5 + $0x20] sm:$0xf]
  %v184 = vld [vmem:[%s5 + $0x24] sm:$0xf]
  %v185 = vld [vmem:[%s5 + $0x28] sm:$0xf]
  %v186 = vld [vmem:[%s5 + $0x2c] sm:$0xf]
  %v187 = vld [vmem:[%s5 + $0x30] sm:$0xf]
  %v188 = vld [vmem:[%s5 + $0x34] sm:$0xf]
  %v189 = vld [vmem:[%s5 + $0x38] sm:$0xf]
  %v190 = vld [vmem:[%s5 + $0x3c] sm:$0xf]
  %v191 = vld [vmem:[%s6] sm:$0x1]
  %v193 = vlaneseq
  %v194 = vshrl.u32 %v193, 7
  %v195 = vsub.s32 0, %v194
  %v196 = vrot.slane %v191, %v195
  %v214 = vunpack.c.l.b16 %v175
  %v215 = vunpack.c.l.b16 %v176
  %v216 = vunpack.c.l.b16 %v177
  %v217 = vunpack.c.l.b16 %v178
  %v218 = vunpack.c.l.b16 %v179
  %v219 = vunpack.c.l.b16 %v180
  %v220 = vunpack.c.l.b16 %v181
  %v221 = vunpack.c.l.b16 %v182
  %v222 = vunpack.c.l.b16 %v183
  %v223 = vunpack.c.l.b16 %v184
  %v224 = vunpack.c.l.b16 %v185
  %v225 = vunpack.c.l.b16 %v186
  %v226 = vunpack.c.l.b16 %v187
  %v227 = vunpack.c.l.b16 %v188
  %v228 = vunpack.c.l.b16 %v189
  %v229 = vunpack.c.l.b16 %v190
  %v230 = vpack.c.b16 %v215, %v214
  %v231 = vpack.c.b16 %v217, %v216
  %v232 = vpack.c.b16 %v219, %v218
  %v233 = vpack.c.b16 %v221, %v220
  %v234 = vpack.c.b16 %v223, %v222
  %v235 = vpack.c.b16 %v225, %v224
  %v236 = vpack.c.b16 %v227, %v226
  %v237 = vpack.c.b16 %v229, %v228
  %246 = vmatprep.subr.bf16.mxu0 0
  %247 = vmatpush1.bf16.msra.mxu0 %v230
  %248 = vmatprep.subr.bf16.mxu0 0
  %249 = vmatpush1.bf16.msra.mxu0 %v231
  %250 = vmatprep.subr.bf16.mxu0 0
  %251 = vmatpush1.bf16.msra.mxu0 %v232
  %252 = vmatprep.subr.bf16.mxu0 0
  %253 = vmatpush1.bf16.msra.mxu0 %v233
  %254 = vmatprep.subr.bf16.mxu0 0
  %255 = vmatpush1.bf16.msra.mxu0 %v234
  %256 = vmatprep.subr.bf16.mxu0 0
  %257 = vmatpush1.bf16.msra.mxu0 %v235
  %258 = vmatprep.subr.bf16.mxu0 0
  %259 = vmatpush1.bf16.msra.mxu0 %v236
  %260 = vmatprep.subr.bf16.mxu0 0
  %261 = vmatpush1.bf16.msra.mxu0 %v237
  %262 = vmatprep.subr.bf16.mxu0 0
  %263 = vmatpush1.bf16.msra.mxu0 0
  %264 = vmatprep.subr.bf16.mxu0 0
  %265 = vmatpush1.bf16.msra.mxu0 0
  %266 = vmatprep.subr.bf16.mxu0 0
  %267 = vmatpush1.bf16.msra.mxu0 0
  %268 = vmatprep.subr.bf16.mxu0 0
  %269 = vmatpush1.bf16.msra.mxu0 0
  %270 = vmatprep.subr.bf16.mxu0 0
  %271 = vmatpush1.bf16.msra.mxu0 0
  %272 = vmatprep.subr.bf16.mxu0 0
  %273 = vmatpush1.bf16.msra.mxu0 0
  %274 = vmatprep.subr.bf16.mxu0 0
  %275 = vmatpush1.bf16.msra.mxu0 0
  %276 = vmatprep.subr.bf16.mxu0 0
  %277 = vmatpush1.bf16.msra.mxu0 0
  %278 = vmatprep.mubr.bf16.mxu0 0
  %279 = vmatmul.mubr.bf16.gmra.mrb[0].mxu0 %v174
  %v280 = vpop.f32.mrb[0].mxu0
  %v281 = vadd.f32 %v196, %v280
  %v282 = vpop.f32.mrb[0].mxu0
  %v283 = vpop.f32.mrb[0].mxu0
  %v284 = vpop.f32.mrb[0].mxu0
  %285 = vdwg.mxu0
  %v286 = vlaneseq
  %v287 = vand.u32 %v286, 127
  %vm288 = vcmp.ge.s32.totalorder %v287, 4
  %v289 = vmul.f32 %v281, 1.442695
  %v290 = vpow.pop %v289
  %v291 = vsel %vm288, %v290, %v281
  %vm292 = vcmask 64512
  %293 = vst.msk [vmem:[%s7] sm:$0xff] %vm292, %v291
  // Predicated region
  $region30: #{actor_mlp_batched.1} parent=0 // pred_check
    _
  $region31: #{actor_mlp_batched.1} parent=0 // pred_check_branch
    %295 = sbr.rel (0) target = $region33
  $region32: #{actor_mlp_batched.1} parent=0 // pred_region
    _
  $region33: #{actor_mlp_batched.1} parent=0 // pred_fallthru
    _
  // Predicated region
  $region34: #{actor_mlp_batched.1} parent=0 // pred_check
    _
  $region35: #{actor_mlp_batched.1} parent=0 // pred_check_branch
    %297 = sbr.rel (0) target = $region37
  $region36: #{actor_mlp_batched.1} parent=0 // pred_region
    _
  $region37: #{actor_mlp_batched.1} parent=0 // pred_fallthru
    _

</llo_original>
